<compile_context>
chip_gen: v7x
topology: tpu7x:2x2x1
jax: 0.10.0
libtpu: 0.0.40
codegen_flags: <defaults>
</compile_context>

<pallas_src>
import functools
import math

import jax
import jax.numpy as jnp
import numpy as np
from jax.experimental import pallas as pl
from jax.experimental.pallas import tpu as pltpu

_LANES = 128
_LOG_1E6 = math.log(1e-6)   # lower clip of log(ratio) in log space


def _round_up(x, m):
    return (x + m - 1) // m * m


def _fold_segments(v, rows, lanes):
    """(rows, s_blk, lanes) -> (rows, 8, lanes) by summing aligned 8-sublane
    chunks.  Static, tile-aligned slices: pure VALU vreg adds, no relayout."""
    s = v.shape[1]
    acc = v[:, 0:8, :]
    for j in range(1, s // 8):
        acc = acc + v[:, 8 * j:8 * (j + 1), :]
    return acc


def _mips_loss_kernel(x_ref, t_ref, tw_ref, iw_ref,
                      task_out_ref, ips_out_ref,
                      acc_task_ref, acc_ips_ref,
                      *, activation, batch, block_cols, blocks_per_split,
                      first_full_blocks, needs_mask):
    split = pl.program_id(0)
    blk = pl.program_id(1)
    nblk = pl.num_programs(1)

    @pl.when(blk == 0)
    def _init():
        acc_task_ref[...] = jnp.zeros_like(acc_task_ref)
        acc_ips_ref[...] = jnp.zeros_like(acc_ips_ref)

    x = x_ref[...]            # (T, S_BLK, 128): tasks lead, batch fills vregs
    t = t_ref[...]
    num_t, s_blk, lanes = x.shape

    if activation:
        # --- logit-space BCE:  p = sigmoid(x) = 1/(1+e),  e = exp(-x) --------
        #   log p      = -log1p(e)
        #   log(1 - p) = log p - x
        # One exp + one log per element (instead of exp/recip + 2 logs).
        e = jnp.exp(-x)
        sp = jnp.log1p(e)                               # = -log p  (>= 0)
        logp = jnp.maximum(-sp, -100.0)
        log1mp = jnp.maximum(-sp - x, -100.0)
        contrib_task = -(t * logp + (1.0 - t) * log1mp)

        # --- IPS branch on task pairs (i-1, i) --------------------------------
        #   ratio   = p_i / p_{i-1} = (1 + e_{i-1}) / (1 + e_i)
        #   1/p_{i-1} = 1 + e_{i-1}                       (no reciprocal)
        #   log(clip(ratio, 1e-6, 1)) = clip(sp_{i-1} - sp_i, log 1e-6, 0)
        e_prev = e[:-1]
        e_cur = e[1:]
        sp_prev = sp[:-1]
        sp_cur = sp[1:]
        lbl_prev = t[:-1]
        lbl_cur = t[1:]

        one_over_p_prev = 1.0 + e_prev
        ratio = one_over_p_prev / (1.0 + e_cur)
        p_tmp = jnp.clip(ratio, 1e-6, 1.0)
        logp_tmp = jnp.clip(sp_prev - sp_cur, _LOG_1E6, 0.0)   # -100 clamp dead
        log1mp_tmp = jnp.maximum(jnp.log(1.0 - p_tmp), -100.0)
        ips = jnp.minimum(one_over_p_prev, 1e5)    # -1e5 lower clamp dead (>0)
        bce_ips = -(lbl_cur * logp_tmp + (1.0 - lbl_cur) * log1mp_tmp)
        contrib_ips = bce_ips * lbl_prev * ips
    else:
        # Inputs are already probabilities: follow the PyTorch math verbatim.
        p = x
        logp = jnp.maximum(jnp.log(p), -100.0)
        log1mp = jnp.maximum(jnp.log(1.0 - p), -100.0)
        contrib_task = -(t * logp + (1.0 - t) * log1mp)

        p_prev = p[:-1]
        p_cur = p[1:]
        lbl_prev = t[:-1]
        lbl_cur = t[1:]
        # TODO(synk): pl.reciprocal(p_prev, approx=True) would shave the NR
        # refinement VALU ops here if exact parity on this non-default path is
        # relaxed.
        inv_prev = 1.0 / p_prev
        p_tmp = jnp.clip(p_cur * inv_prev, 1e-6, 1.0)
        ips = jnp.clip(inv_prev, -1e5, 1e5)
        logp_tmp = jnp.maximum(jnp.log(p_tmp), -100.0)
        log1mp_tmp = jnp.maximum(jnp.log(1.0 - p_tmp), -100.0)
        bce_ips = -(lbl_cur * logp_tmp + (1.0 - lbl_cur) * log1mp_tmp)
        contrib_ips = bce_ips * lbl_prev * ips

    def _accumulate(c_task, c_ips):
        # Fold the segment axis into the small (rows, 8, 128) accumulators:
        # same VALU adds as a full-width RMW but one vld/vst per task row
        # instead of one per vreg (helps v5e's single vector-store slot).
        acc_task_ref[...] += _fold_segments(c_task, num_t, lanes)
        acc_ips_ref[...] += _fold_segments(c_ips, num_t - 1, lanes)

    if needs_mask:
        gbi = split * blocks_per_split + blk          # global block index

        @pl.when(gbi < first_full_blocks)             # fully valid block
        def _full():
            _accumulate(contrib_task, contrib_ips)

        @pl.when(gbi >= first_full_blocks)            # partial / padded block
        def _partial():
            base = gbi * block_cols
            col = (base
                   + jax.lax.broadcasted_iota(jnp.int32, x.shape, 1) * lanes
                   + jax.lax.broadcasted_iota(jnp.int32, x.shape, 2))
            valid = col < batch
            # jnp.where (select) is NaN-safe: padded lanes never poison sums.
            _accumulate(jnp.where(valid, contrib_task, 0.0),
                        jnp.where(valid[1:], contrib_ips, 0.0))
    else:
        _accumulate(contrib_task, contrib_ips)

    @pl.when(blk == nblk - 1)
    def _finalize():
        inv_b = jnp.float32(1.0 / batch)
        task_sum = jnp.sum(jnp.sum(acc_task_ref[...], axis=1), axis=-1,
                           keepdims=True)                       # (T, 1)
        ips_sum = jnp.sum(jnp.sum(acc_ips_ref[...], axis=1), axis=-1,
                          keepdims=True)                        # (T-1, 1)
        task_out_ref[...] = task_sum * inv_b * tw_ref[...]
        ips_out_ref[...] = ips_sum * inv_b * iw_ref[...]


def mips_loss(inputs, targets, ips_weights=0.1, task_weights=1.0,
              activation=True, s_blk=None, n_splits=None):
    """JAX/Pallas equivalent of MIPSLoss.forward.

    Returns (total_loss, loss_ips [T-1], loss_task [T]).
    """
    inputs = jnp.asarray(inputs, jnp.float32)
    targets = jnp.asarray(targets, jnp.float32)
    B, T = targets.shape
    assert T >= 2

    # Per-task / per-pair weights (fused into the kernel epilogue).
    if isinstance(ips_weights, list):
        assert len(ips_weights) + 1 == T
        ips_w = jnp.asarray(ips_weights, jnp.float32).reshape(T - 1, 1)
    else:
        ips_w = jnp.full((T - 1, 1), float(ips_weights), jnp.float32)
    if isinstance(task_weights, list):
        assert len(task_weights) == T
        task_w = jnp.asarray(task_weights, jnp.float32).reshape(T, 1)
    else:
        task_w = jnp.full((T, 1), float(task_weights), jnp.float32)

    # ---- tiling: batch folded into [T, seg, 128]; seg tiled by S_BLK --------
    seg_raw = -(-B // _LANES)
    if s_blk is None:
        s_blk = 256                                   # 32768 columns per step
    s_blk = max(8, _round_up(int(s_blk), 8))
    s_blk = min(s_blk, _round_up(seg_raw, 8))
    blocks_needed = -(-seg_raw // s_blk)
    if n_splits is None:
        n_splits = 2 if blocks_needed >= 2 else 1     # v7x: one half per TC
    n_splits = max(1, min(int(n_splits), blocks_needed))
    blocks_per_split = -(-blocks_needed // n_splits)
    total_blocks = n_splits * blocks_per_split
    seg_pad = total_blocks * s_blk
    b_pad = seg_pad * _LANES
    block_cols = s_blk * _LANES
    first_full_blocks = B // block_cols               # blocks with no padding
    needs_mask = (b_pad != B)

    # Transpose + pad + reshape fuse into the single copy that materialises the
    # kernel's lane-dense layout (jnp.where masking makes the pad value moot).
    pad = b_pad - B
    x3 = jnp.pad(inputs.T, ((0, 0), (0, pad))).reshape(T, seg_pad, _LANES)
    t3 = jnp.pad(targets.T, ((0, 0), (0, pad))).reshape(T, seg_pad, _LANES)

    kernel = functools.partial(
        _mips_loss_kernel, activation=activation, batch=B,
        block_cols=block_cols, blocks_per_split=blocks_per_split,
        first_full_blocks=first_full_blocks, needs_mask=needs_mask)

    trans_per_elem = (2 * T + 2 * (T - 1)) if activation else (2 * T + 3 * (T - 1))
    cost = pl.CostEstimate(
        flops=int(30 * B * T),
        transcendentals=int(B * trans_per_elem),
        bytes_accessed=int(2 * B * T * 4),
    )

    task_part, ips_part = pl.pallas_call(
        kernel,
        out_shape=(
            jax.ShapeDtypeStruct((n_splits, T, 1), jnp.float32),
            jax.ShapeDtypeStruct((n_splits, T - 1, 1), jnp.float32),
        ),
        grid_spec=pltpu.PrefetchScalarGridSpec(
            num_scalar_prefetch=0,
            grid=(n_splits, blocks_per_split),
            in_specs=[
                pl.BlockSpec((T, s_blk, _LANES),
                             lambda s, b: (0, s * blocks_per_split + b, 0)),
                pl.BlockSpec((T, s_blk, _LANES),
                             lambda s, b: (0, s * blocks_per_split + b, 0)),
                pl.BlockSpec((T, 1), lambda s, b: (0, 0)),
                pl.BlockSpec((T - 1, 1), lambda s, b: (0, 0)),
            ],
            out_specs=[
                pl.BlockSpec((None, T, 1), lambda s, b: (s, 0, 0)),
                pl.BlockSpec((None, T - 1, 1), lambda s, b: (s, 0, 0)),
            ],
            scratch_shapes=[
                pltpu.VMEM((T, 8, _LANES), jnp.float32),      # task partials
                pltpu.VMEM((T - 1, 8, _LANES), jnp.float32),  # IPS partials
            ],
        ),
        compiler_params=pltpu.CompilerParams(
            dimension_semantics=("parallel", "arbitrary"),
        ),
        cost_estimate=cost,
    )(x3, t3, task_w, ips_w)

    # Trivial cross-split combine (the two TC partials on v7x).
    loss_task = jnp.sum(task_part[:, :, 0], axis=0)   # (T,)
    loss_ips = jnp.sum(ips_part[:, :, 0], axis=0)     # (T-1,)
    total = jnp.sum(loss_task) + jnp.sum(loss_ips)
    return total, loss_ips, loss_task


# ----------------------------- pure-JAX reference ---------------------------
def _bce_elem_ref(p, t):
    logp = jnp.maximum(jnp.log(p), -100.0)
    log1mp = jnp.maximum(jnp.log(1.0 - p), -100.0)
    return -(t * logp + (1.0 - t) * log1mp)


def _mips_loss_ref(inputs, targets, ips_weights=0.1, task_weights=1.0,
                   activation=True):
    inputs = jnp.asarray(inputs, jnp.float32)
    targets = jnp.asarray(targets, jnp.float32)
    T = targets.shape[-1]
    x = jax.nn.sigmoid(inputs) if activation else inputs
    loss_task = [jnp.mean(_bce_elem_ref(x[:, i], targets[:, i])) for i in range(T)]
    loss_ips = []
    for i in range(1, T):
        p = jnp.clip(x[:, i] / x[:, i - 1], 1e-6, 1.0)
        ips = jnp.clip(1.0 / x[:, i - 1], -1e5, 1e5)
        l = _bce_elem_ref(p, targets[:, i])
        loss_ips.append(jnp.mean(l * targets[:, i - 1] * ips))
    iw = [ips_weights] * (T - 1) if not isinstance(ips_weights, list) else ips_weights
    tw = [task_weights] * T if not isinstance(task_weights, list) else task_weights
    loss_ips = [loss_ips[i] * iw[i] for i in range(T - 1)]
    loss_task = [loss_task[i] * tw[i] for i in range(T)]
    return sum(loss_ips) + sum(loss_task), jnp.stack(loss_ips), jnp.stack(loss_task)


def _check(name, got, ref, rtol=1e-4, atol=1e-5):
    g_total, g_ips, g_task = got
    r_total, r_ips, r_task = ref
    np.testing.assert_allclose(np.asarray(g_total), np.asarray(r_total),
                               rtol=rtol, atol=atol, err_msg=f"{name}: total")
    np.testing.assert_allclose(np.asarray(g_ips), np.asarray(r_ips),
                               rtol=rtol, atol=atol, err_msg=f"{name}: ips")
    np.testing.assert_allclose(np.asarray(g_task), np.asarray(r_task),
                               rtol=rtol, atol=atol, err_msg=f"{name}: task")


if __name__ == "__main__":
    key = jax.random.PRNGKey(0)
    k1, k2, k3, k4, k5, k6, k7, k8 = jax.random.split(key, 8)

    # --- case 1: small module-spec shapes (B=8, T=3), scalar weights ---------
    B, T = 8, 3
    logits = jax.random.normal(k1, (B, T), dtype=jnp.float32)
    labels = jax.random.bernoulli(k2, p=0.5, shape=(B, T)).astype(jnp.float32)
    got = mips_loss(logits, labels, 0.1, 1.0, activation=True)
    jax.block_until_ready(got[0])
    _check("case1", got, _mips_loss_ref(logits, labels, 0.1, 1.0, True))

    # --- case 2: non-multiple-of-128 batch, list weights, single block -------
    B2, T2 = 300, 4
    logits2 = jax.random.normal(k3, (B2, T2), dtype=jnp.float32)
    labels2 = jax.random.bernoulli(k4, p=0.5, shape=(B2, T2)).astype(jnp.float32)
    iw_list, tw_list = [0.2, 0.3, 0.1], [1.0, 0.5, 2.0, 1.0]
    got2 = mips_loss(logits2, labels2, iw_list, tw_list, activation=True)
    jax.block_until_ready(got2[0])
    _check("case2", got2, _mips_loss_ref(logits2, labels2, iw_list, tw_list, True))

    # --- case 3: multi-block grid + 2-way split + full/partial/padded blocks --
    B3, T3 = 2600, 3
    logits3 = jax.random.normal(k5, (B3, T3), dtype=jnp.float32)
    labels3 = jax.random.bernoulli(k6, p=0.5, shape=(B3, T3)).astype(jnp.float32)
    got3 = mips_loss(logits3, labels3, 0.1, 1.0, activation=True,
                     s_blk=8, n_splits=2)   # forces a (2, 2) grid with masking
    jax.block_until_ready(got3[0])
    _check("case3", got3, _mips_loss_ref(logits3, labels3, 0.1, 1.0, True))

    # --- case 4: activation=False path (inputs already probabilities) --------
    B4, T4 = 300, 3
    probs4 = jax.random.uniform(k7, (B4, T4), dtype=jnp.float32,
                                minval=0.05, maxval=0.95)
    labels4 = jax.random.bernoulli(k8, p=0.5, shape=(B4, T4)).astype(jnp.float32)
    got4 = mips_loss(probs4, labels4, 0.1, 1.0, activation=False)
    jax.block_until_ready(got4[0])
    _check("case4", got4, _mips_loss_ref(probs4, labels4, 0.1, 1.0, False))

    print("KERNEL_OK")
</pallas_src>

<mosaic_0001>
module attributes {stable_mosaic.version = 11 : i64} {
  func.func @_mips_loss_kernel(%arg0: i32, %arg1: i32, %arg2: memref<3x8x128xf32, #tpu.memory_space<vmem>>, %arg3: memref<3x8x128xf32, #tpu.memory_space<vmem>>, %arg4: memref<3x1xf32, #tpu.memory_space<vmem>>, %arg5: memref<2x1xf32, #tpu.memory_space<vmem>>, %arg6: memref<1x3x1xf32, #tpu.memory_space<vmem>>, %arg7: memref<1x2x1xf32, #tpu.memory_space<vmem>>, %arg8: memref<3x8x128xf32, #tpu.memory_space<vmem>>, %arg9: memref<2x8x128xf32, #tpu.memory_space<vmem>>) attributes {dimension_semantics = [#tpu.dimension_semantics<parallel>, #tpu.dimension_semantics<arbitrary>], iteration_bounds = array<i64: 1, 1>, scalar_prefetch = 0 : i64, scratch_operands = 2 : i64, tpu.core_type = #tpu.core_type<tc>, window_params = [{transform_indices = @transform_0, window_bounds = array<i64: 3, 8, 128>}, {transform_indices = @transform_1, window_bounds = array<i64: 3, 8, 128>}, {pipeline_mode = #tpu.pipeline_mode<synchronous>, transform_indices = @transform_2, window_bounds = array<i64: 3, 1>}, {pipeline_mode = #tpu.pipeline_mode<synchronous>, transform_indices = @transform_3, window_bounds = array<i64: 2, 1>}, {transform_indices = @transform_4, window_bounds = array<i64: 1, 3, 1>}, {transform_indices = @transform_5, window_bounds = array<i64: 1, 2, 1>}]} {
    %c0_i32 = arith.constant 0 : i32
    %0 = arith.cmpi eq, %arg1, %c0_i32 : i32
    %1 = arith.extui %0 : i1 to i32
    %c0_i32_0 = arith.constant 0 : i32
    %2 = arith.cmpi ne, %1, %c0_i32_0 : i32
    scf.if %2 {
      %cst_29 = arith.constant 0.000000e+00 : f32
      %72 = vector.broadcast %cst_29 : f32 to vector<3x8x128xf32>
      %c0_30 = arith.constant 0 : index
      %c0_31 = arith.constant 0 : index
      %c0_32 = arith.constant 0 : index
      %73 = vector.load %arg8[%c0_30, %c0_31, %c0_32] : memref<3x8x128xf32, #tpu.memory_space<vmem>>, vector<3x8x128xf32>
      tpu.vector_store %arg8[%c0_30, %c0_31, %c0_32], %72 {strides = array<i32>} : memref<3x8x128xf32, #tpu.memory_space<vmem>>, vector<3x8x128xf32>,
      %cst_33 = arith.constant 0.000000e+00 : f32
      %74 = vector.broadcast %cst_33 : f32 to vector<2x8x128xf32>
      %c0_34 = arith.constant 0 : index
      %c0_35 = arith.constant 0 : index
      %c0_36 = arith.constant 0 : index
      %75 = vector.load %arg9[%c0_34, %c0_35, %c0_36] : memref<2x8x128xf32, #tpu.memory_space<vmem>>, vector<2x8x128xf32>
      tpu.vector_store %arg9[%c0_34, %c0_35, %c0_36], %74 {strides = array<i32>} : memref<2x8x128xf32, #tpu.memory_space<vmem>>, vector<2x8x128xf32>,
    } else {
    }
    %c0 = arith.constant 0 : index
    %c0_1 = arith.constant 0 : index
    %c0_2 = arith.constant 0 : index
    %3 = vector.load %arg2[%c0, %c0_1, %c0_2] : memref<3x8x128xf32, #tpu.memory_space<vmem>>, vector<3x8x128xf32>
    %c0_3 = arith.constant 0 : index
    %c0_4 = arith.constant 0 : index
    %c0_5 = arith.constant 0 : index
    %4 = vector.load %arg3[%c0_3, %c0_4, %c0_5] : memref<3x8x128xf32, #tpu.memory_space<vmem>>, vector<3x8x128xf32>
    %cst = arith.constant 0.000000e+00 : f32
    %5 = vector.broadcast %cst : f32 to vector<3x8x128xf32>
    %6 = arith.subf %5, %3 : vector<3x8x128xf32>
    %7 = math.exp %6 : vector<3x8x128xf32>
    %8 = math.log1p %7 : vector<3x8x128xf32>
    %cst_6 = arith.constant 0.000000e+00 : f32
    %9 = vector.broadcast %cst_6 : f32 to vector<3x8x128xf32>
    %10 = arith.subf %9, %8 : vector<3x8x128xf32>
    %cst_7 = arith.constant -1.000000e+02 : f32
    %11 = vector.broadcast %cst_7 : f32 to vector<3x8x128xf32>
    %12 = arith.maximumf %10, %11 : vector<3x8x128xf32>
    %cst_8 = arith.constant 0.000000e+00 : f32
    %13 = vector.broadcast %cst_8 : f32 to vector<3x8x128xf32>
    %14 = arith.subf %13, %8 : vector<3x8x128xf32>
    %15 = arith.subf %14, %3 : vector<3x8x128xf32>
    %cst_9 = arith.constant -1.000000e+02 : f32
    %16 = vector.broadcast %cst_9 : f32 to vector<3x8x128xf32>
    %17 = arith.maximumf %15, %16 : vector<3x8x128xf32>
    %18 = arith.mulf %4, %12 : vector<3x8x128xf32>
    %cst_10 = arith.constant 1.000000e+00 : f32
    %19 = vector.broadcast %cst_10 : f32 to vector<3x8x128xf32>
    %20 = arith.subf %19, %4 : vector<3x8x128xf32>
    %21 = arith.mulf %20, %17 : vector<3x8x128xf32>
    %22 = arith.addf %18, %21 : vector<3x8x128xf32>
    %cst_11 = arith.constant 0.000000e+00 : f32
    %23 = vector.broadcast %cst_11 : f32 to vector<3x8x128xf32>
    %24 = arith.subf %23, %22 : vector<3x8x128xf32>
    %25 = vector.extract_strided_slice %7 {offsets = [0, 0, 0], sizes = [2, 8, 128], strides = [1, 1, 1]} : vector<3x8x128xf32> to vector<2x8x128xf32>
    %26 = vector.extract_strided_slice %7 {offsets = [1, 0, 0], sizes = [2, 8, 128], strides = [1, 1, 1]} : vector<3x8x128xf32> to vector<2x8x128xf32>
    %27 = vector.extract_strided_slice %8 {offsets = [0, 0, 0], sizes = [2, 8, 128], strides = [1, 1, 1]} : vector<3x8x128xf32> to vector<2x8x128xf32>
    %28 = vector.extract_strided_slice %8 {offsets = [1, 0, 0], sizes = [2, 8, 128], strides = [1, 1, 1]} : vector<3x8x128xf32> to vector<2x8x128xf32>
    %29 = vector.extract_strided_slice %4 {offsets = [0, 0, 0], sizes = [2, 8, 128], strides = [1, 1, 1]} : vector<3x8x128xf32> to vector<2x8x128xf32>
    %30 = vector.extract_strided_slice %4 {offsets = [1, 0, 0], sizes = [2, 8, 128], strides = [1, 1, 1]} : vector<3x8x128xf32> to vector<2x8x128xf32>
    %cst_12 = arith.constant 1.000000e+00 : f32
    %31 = vector.broadcast %cst_12 : f32 to vector<2x8x128xf32>
    %32 = arith.addf %31, %25 : vector<2x8x128xf32>
    %cst_13 = arith.constant 1.000000e+00 : f32
    %33 = vector.broadcast %cst_13 : f32 to vector<2x8x128xf32>
    %34 = arith.addf %33, %26 : vector<2x8x128xf32>
    %35 = arith.divf %32, %34 : vector<2x8x128xf32>
    %cst_14 = arith.constant 9.99999997E-7 : f32
    %cst_15 = arith.constant 1.000000e+00 : f32
    %36 = vector.broadcast %cst_14 : f32 to vector<2x8x128xf32>
    %37 = arith.maximumf %36, %35 : vector<2x8x128xf32>
    %38 = vector.broadcast %cst_15 : f32 to vector<2x8x128xf32>
    %39 = arith.minimumf %38, %37 : vector<2x8x128xf32>
    %40 = arith.subf %27, %28 : vector<2x8x128xf32>
    %cst_16 = arith.constant -13.8155107 : f32
    %cst_17 = arith.constant 0.000000e+00 : f32
    %41 = vector.broadcast %cst_16 : f32 to vector<2x8x128xf32>
    %42 = arith.maximumf %41, %40 : vector<2x8x128xf32>
    %43 = vector.broadcast %cst_17 : f32 to vector<2x8x128xf32>
    %44 = arith.minimumf %43, %42 : vector<2x8x128xf32>
    %cst_18 = arith.constant 1.000000e+00 : f32
    %45 = vector.broadcast %cst_18 : f32 to vector<2x8x128xf32>
    %46 = arith.subf %45, %39 : vector<2x8x128xf32>
    %47 = math.log %46 : vector<2x8x128xf32>
    %cst_19 = arith.constant -1.000000e+02 : f32
    %48 = vector.broadcast %cst_19 : f32 to vector<2x8x128xf32>
    %49 = arith.maximumf %47, %48 : vector<2x8x128xf32>
    %cst_20 = arith.constant 1.000000e+05 : f32
    %50 = vector.broadcast %cst_20 : f32 to vector<2x8x128xf32>
    %51 = arith.minimumf %32, %50 : vector<2x8x128xf32>
    %52 = arith.mulf %30, %44 : vector<2x8x128xf32>
    %cst_21 = arith.constant 1.000000e+00 : f32
    %53 = vector.broadcast %cst_21 : f32 to vector<2x8x128xf32>
    %54 = arith.subf %53, %30 : vector<2x8x128xf32>
    %55 = arith.mulf %54, %49 : vector<2x8x128xf32>
    %56 = arith.addf %52, %55 : vector<2x8x128xf32>
    %cst_22 = arith.constant 0.000000e+00 : f32
    %57 = vector.broadcast %cst_22 : f32 to vector<2x8x128xf32>
    %58 = arith.subf %57, %56 : vector<2x8x128xf32>
    %59 = arith.mulf %58, %29 : vector<2x8x128xf32>
    %60 = arith.mulf %59, %51 : vector<2x8x128xf32>
    %c1_i32 = arith.constant 1 : i32
    %61 = arith.muli %arg0, %c1_i32 : i32
    %62 = arith.addi %61, %arg1 : i32
    %c0_i32_23 = arith.constant 0 : i32
    %63 = arith.cmpi slt, %62, %c0_i32_23 : i32
    %64 = arith.extui %63 : i1 to i32
    %c0_i32_24 = arith.constant 0 : i32
    %65 = arith.cmpi ne, %64, %c0_i32_24 : i32
    scf.if %65 {
      %c0_29 = arith.constant 0 : index
      %c0_30 = arith.constant 0 : index
      %c0_31 = arith.constant 0 : index
      %72 = vector.load %arg8[%c0_29, %c0_30, %c0_31] : memref<3x8x128xf32, #tpu.memory_space<vmem>>, vector<3x8x128xf32>
      %73 = arith.addf %72, %24 : vector<3x8x128xf32>
      %c0_32 = arith.constant 0 : index
      %c0_33 = arith.constant 0 : index
      %c0_34 = arith.constant 0 : index
      %74 = vector.load %arg8[%c0_32, %c0_33, %c0_34] : memref<3x8x128xf32, #tpu.memory_space<vmem>>, vector<3x8x128xf32>
      tpu.vector_store %arg8[%c0_32, %c0_33, %c0_34], %73 {strides = array<i32>} : memref<3x8x128xf32, #tpu.memory_space<vmem>>, vector<3x8x128xf32>,
      %c0_35 = arith.constant 0 : index
      %c0_36 = arith.constant 0 : index
      %c0_37 = arith.constant 0 : index
      %75 = vector.load %arg9[%c0_35, %c0_36, %c0_37] : memref<2x8x128xf32, #tpu.memory_space<vmem>>, vector<2x8x128xf32>
      %76 = arith.addf %75, %60 : vector<2x8x128xf32>
      %c0_38 = arith.constant 0 : index
      %c0_39 = arith.constant 0 : index
      %c0_40 = arith.constant 0 : index
      %77 = vector.load %arg9[%c0_38, %c0_39, %c0_40] : memref<2x8x128xf32, #tpu.memory_space<vmem>>, vector<2x8x128xf32>
      tpu.vector_store %arg9[%c0_38, %c0_39, %c0_40], %76 {strides = array<i32>} : memref<2x8x128xf32, #tpu.memory_space<vmem>>, vector<2x8x128xf32>,
    } else {
    }
    %c0_i32_25 = arith.constant 0 : i32
    %66 = arith.cmpi sge, %62, %c0_i32_25 : i32
    %67 = arith.extui %66 : i1 to i32
    %c0_i32_26 = arith.constant 0 : i32
    %68 = arith.cmpi ne, %67, %c0_i32_26 : i32
    scf.if %68 {
      %c1024_i32 = arith.constant 1024 : i32
      %72 = arith.muli %62, %c1024_i32 : i32
      %73 = tpu.iota {dimensions = array<i32: 1>} : vector<3x8x128xi32>
      %c128_i32 = arith.constant 128 : i32
      %74 = vector.broadcast %c128_i32 : i32 to vector<3x8x128xi32>
      %75 = arith.muli %73, %74 : vector<3x8x128xi32>
      %76 = vector.broadcast %72 : i32 to vector<3x8x128xi32>
      %77 = arith.addi %76, %75 : vector<3x8x128xi32>
      %78 = tpu.iota {dimensions = array<i32: 2>} : vector<3x8x128xi32>
      %79 = arith.addi %77, %78 : vector<3x8x128xi32>
      %c8_i32 = arith.constant 8 : i32
      %80 = vector.broadcast %c8_i32 : i32 to vector<3x8x128xi32>
      %81 = arith.cmpi slt, %79, %80 : vector<3x8x128xi32>
      %cst_29 = arith.constant 0.000000e+00 : f32
      %82 = vector.broadcast %cst_29 : f32 to vector<3x8x128xf32>
      %83 = arith.select %81, %24, %82 : vector<3x8x128xi1>, vector<3x8x128xf32>
      %84 = vector.extract_strided_slice %81 {offsets = [1, 0, 0], sizes = [2, 8, 128], strides = [1, 1, 1]} : vector<3x8x128xi1> to vector<2x8x128xi1>
      %cst_30 = arith.constant 0.000000e+00 : f32
      %85 = vector.broadcast %cst_30 : f32 to vector<2x8x128xf32>
      %86 = arith.select %84, %60, %85 : vector<2x8x128xi1>, vector<2x8x128xf32>
      %c0_31 = arith.constant 0 : index
      %c0_32 = arith.constant 0 : index
      %c0_33 = arith.constant 0 : index
      %87 = vector.load %arg8[%c0_31, %c0_32, %c0_33] : memref<3x8x128xf32, #tpu.memory_space<vmem>>, vector<3x8x128xf32>
      %88 = arith.addf %87, %83 : vector<3x8x128xf32>
      %c0_34 = arith.constant 0 : index
      %c0_35 = arith.constant 0 : index
      %c0_36 = arith.constant 0 : index
      %89 = vector.load %arg8[%c0_34, %c0_35, %c0_36] : memref<3x8x128xf32, #tpu.memory_space<vmem>>, vector<3x8x128xf32>
      tpu.vector_store %arg8[%c0_34, %c0_35, %c0_36], %88 {strides = array<i32>} : memref<3x8x128xf32, #tpu.memory_space<vmem>>, vector<3x8x128xf32>,
      %c0_37 = arith.constant 0 : index
      %c0_38 = arith.constant 0 : index
      %c0_39 = arith.constant 0 : index
      %90 = vector.load %arg9[%c0_37, %c0_38, %c0_39] : memref<2x8x128xf32, #tpu.memory_space<vmem>>, vector<2x8x128xf32>
      %91 = arith.addf %90, %86 : vector<2x8x128xf32>
      %c0_40 = arith.constant 0 : index
      %c0_41 = arith.constant 0 : index
      %c0_42 = arith.constant 0 : index
      %92 = vector.load %arg9[%c0_40, %c0_41, %c0_42] : memref<2x8x128xf32, #tpu.memory_space<vmem>>, vector<2x8x128xf32>
      tpu.vector_store %arg9[%c0_40, %c0_41, %c0_42], %91 {strides = array<i32>} : memref<2x8x128xf32, #tpu.memory_space<vmem>>, vector<2x8x128xf32>,
    } else {
    }
    %c0_i32_27 = arith.constant 0 : i32
    %69 = arith.cmpi eq, %arg1, %c0_i32_27 : i32
    %70 = arith.extui %69 : i1 to i32
    %c0_i32_28 = arith.constant 0 : i32
    %71 = arith.cmpi ne, %70, %c0_i32_28 : i32
    scf.if %71 {
      %c0_29 = arith.constant 0 : index
      %c0_30 = arith.constant 0 : index
      %c0_31 = arith.constant 0 : index
      %72 = vector.load %arg8[%c0_29, %c0_30, %c0_31] : memref<3x8x128xf32, #tpu.memory_space<vmem>>, vector<3x8x128xf32>
      %cst_32 = arith.constant dense<0.000000e+00> : vector<3x128xf32>
      %73 = vector.multi_reduction <add>, %72, %cst_32 [1] : vector<3x8x128xf32> to vector<3x128xf32>
      %cst_33 = arith.constant dense<0.000000e+00> : vector<3xf32>
      %74 = vector.multi_reduction <add>, %73, %cst_33 [1] : vector<3x128xf32> to vector<3xf32>
      %75 = vector.shape_cast %74 : vector<3xf32> to vector<3x1xf32>
      %c0_34 = arith.constant 0 : index
      %c0_35 = arith.constant 0 : index
      %c0_36 = arith.constant 0 : index
      %76 = vector.load %arg9[%c0_34, %c0_35, %c0_36] : memref<2x8x128xf32, #tpu.memory_space<vmem>>, vector<2x8x128xf32>
      %cst_37 = arith.constant dense<0.000000e+00> : vector<2x128xf32>
      %77 = vector.multi_reduction <add>, %76, %cst_37 [1] : vector<2x8x128xf32> to vector<2x128xf32>
      %cst_38 = arith.constant dense<0.000000e+00> : vector<2xf32>
      %78 = vector.multi_reduction <add>, %77, %cst_38 [1] : vector<2x128xf32> to vector<2xf32>
      %79 = vector.shape_cast %78 : vector<2xf32> to vector<2x1xf32>
      %cst_39 = arith.constant 1.250000e-01 : f32
      %80 = vector.broadcast %cst_39 : f32 to vector<3x1xf32>
      %81 = arith.mulf %75, %80 : vector<3x1xf32>
      %c0_40 = arith.constant 0 : index
      %c0_41 = arith.constant 0 : index
      %82 = vector.load %arg4[%c0_40, %c0_41] : memref<3x1xf32, #tpu.memory_space<vmem>>, vector<3x1xf32>
      %83 = arith.mulf %81, %82 : vector<3x1xf32>
      %c0_42 = arith.constant 0 : index
      %c0_43 = arith.constant 0 : index
      %c0_44 = arith.constant 0 : index
      %84 = vector.load %arg6[%c0_42, %c0_43, %c0_44] : memref<1x3x1xf32, #tpu.memory_space<vmem>>, vector<1x3x1xf32>
      %85 = vector.shape_cast %84 : vector<1x3x1xf32> to vector<3x1xf32>
      %86 = vector.shape_cast %83 : vector<3x1xf32> to vector<1x3x1xf32>
      tpu.vector_store %arg6[%c0_42, %c0_43, %c0_44], %86 {strides = array<i32>} : memref<1x3x1xf32, #tpu.memory_space<vmem>>, vector<1x3x1xf32>,
      %cst_45 = arith.constant 1.250000e-01 : f32
      %87 = vector.broadcast %cst_45 : f32 to vector<2x1xf32>
      %88 = arith.mulf %79, %87 : vector<2x1xf32>
      %c0_46 = arith.constant 0 : index
      %c0_47 = arith.constant 0 : index
      %89 = vector.load %arg5[%c0_46, %c0_47] : memref<2x1xf32, #tpu.memory_space<vmem>>, vector<2x1xf32>
      %90 = arith.mulf %88, %89 : vector<2x1xf32>
      %c0_48 = arith.constant 0 : index
      %c0_49 = arith.constant 0 : index
      %c0_50 = arith.constant 0 : index
      %91 = vector.load %arg7[%c0_48, %c0_49, %c0_50] : memref<1x2x1xf32, #tpu.memory_space<vmem>>, vector<1x2x1xf32>
      %92 = vector.shape_cast %91 : vector<1x2x1xf32> to vector<2x1xf32>
      %93 = vector.shape_cast %90 : vector<2x1xf32> to vector<1x2x1xf32>
      tpu.vector_store %arg7[%c0_48, %c0_49, %c0_50], %93 {strides = array<i32>} : memref<1x2x1xf32, #tpu.memory_space<vmem>>, vector<1x2x1xf32>,
    } else {
    }
    return
  }
  func.func @transform_0(%arg0: i32, %arg1: i32) -> (i32, i32, i32) {
    %c1_i32 = arith.constant 1 : i32
    %0 = arith.muli %arg0, %c1_i32 : i32
    %1 = arith.addi %0, %arg1 : i32
    %c0_i32 = arith.constant 0 : i32
    %c0_i32_0 = arith.constant 0 : i32
    %c0_i32_1 = arith.constant 0 : i32
    return %c0_i32, %1, %c0_i32_0 : i32, i32, i32
  }
  func.func @transform_1(%arg0: i32, %arg1: i32) -> (i32, i32, i32) {
    %c1_i32 = arith.constant 1 : i32
    %0 = arith.muli %arg0, %c1_i32 : i32
    %1 = arith.addi %0, %arg1 : i32
    %c0_i32 = arith.constant 0 : i32
    %c0_i32_0 = arith.constant 0 : i32
    %c0_i32_1 = arith.constant 0 : i32
    return %c0_i32, %1, %c0_i32_0 : i32, i32, i32
  }
  func.func @transform_2(%arg0: i32, %arg1: i32) -> (i32, i32) {
    %c0_i32 = arith.constant 0 : i32
    %c0_i32_0 = arith.constant 0 : i32
    %c0_i32_1 = arith.constant 0 : i32
    return %c0_i32, %c0_i32_0 : i32, i32
  }
  func.func @transform_3(%arg0: i32, %arg1: i32) -> (i32, i32) {
    %c0_i32 = arith.constant 0 : i32
    %c0_i32_0 = arith.constant 0 : i32
    %c0_i32_1 = arith.constant 0 : i32
    return %c0_i32, %c0_i32_0 : i32, i32
  }
  func.func @transform_4(%arg0: i32, %arg1: i32) -> (i32, i32, i32) {
    %c0_i32 = arith.constant 0 : i32
    %c0_i32_0 = arith.constant 0 : i32
    %c0_i32_1 = arith.constant 0 : i32
    return %arg0, %c0_i32, %c0_i32_0 : i32, i32, i32
  }
  func.func @transform_5(%arg0: i32, %arg1: i32) -> (i32, i32, i32) {
    %c0_i32 = arith.constant 0 : i32
    %c0_i32_0 = arith.constant 0 : i32
    %c0_i32_1 = arith.constant 0 : i32
    return %arg0, %c0_i32, %c0_i32_0 : i32, i32, i32
  }
}

</mosaic_0001>

<llo_original>
// kernel: tpu_custom_call.1
$region0: #{tpu_custom_call.1}
  #allocation0 [shape = 'u32[]', space=smem, size = 0x4, offset = 0x4, fixed_abs, tag = 'smem constant byte address 0x4 - core index']
  #allocation1 [shape = 'u32[144,128]{1,0:T(1,128)}', space=vmem, size = 0x12000, scoped, tag = 'internal scratch']
  #allocation2 [shape = 'f32[3,8,128]{2,1,0:T(8,128)}', space=vmem, size = 0x3000, scoped, tag = 'scratch operand']
  #allocation3 [shape = 'f32[2,8,128]{2,1,0:T(8,128)}', space=vmem, size = 0x2000, scoped, tag = 'scratch operand']
  %s0 = inlined_call_operand.hbm [shape: f32[3,8,128], index: 0, kind: input, shape index: {}]
  %s1 = inlined_call_operand.hbm [shape: f32[3,8,128], index: 1, kind: input, shape index: {}]
  %s2 = inlined_call_operand.vmem [shape: f32[3,1], index: 2, kind: input, shape index: {}]
  %s3 = inlined_call_operand.vmem [shape: f32[2,1], index: 3, kind: input, shape index: {}]
  %s4 = inlined_call_operand.vmem [shape: f32[1,3,1], index: 4, kind: output, shape index: {0}]
  %s5 = inlined_call_operand.vmem [shape: f32[1,2,1], index: 5, kind: output, shape index: {1}]
  %6 = xla_tuple %s4, %s5
  %s7 = sld [smem:[#allocation0]]
  $region58: #{tpu_custom_call.1} parent=0
    _
  %s9 = ssub.s32 1, %s7
  %s10 = scalar_select 0, %s9, %s7
  $region1: #{tpu_custom_call.1} parent=0
    #allocation4 [shape = 'u8[12288]{0}', space=vmem, size = 0x3000, scoped, tag = 'input window, operand 0, single buffered']
    #allocation5 [shape = 's32[1]{0}', space=sflag, size = 0x4, scoped, tag = 'scoped memory for tpu_custom_call.1']
    #allocation6 [shape = 'u8[12288]{0}', space=vmem, size = 0x3000, scoped, tag = 'input window, operand 1, single buffered']
    #allocation7 [shape = 's32[1]{0}', space=sflag, size = 0x4, scoped, tag = 'scoped memory for tpu_custom_call.1']
    %11 = vsyncpa [#allocation5], 0
    %12 = vsyncpa [#allocation7], 0
    // Predicated region
    $region2: #{tpu_custom_call.1} parent=1 // pred_check
      _
    $region3: #{tpu_custom_call.1} parent=1 // pred_check_branch
      %14 = sbr.rel (0) target = $region5
    $region4: #{tpu_custom_call.1} parent=1 // pred_region
      %s15 = sadd.s32 0, 0
      %s17 = ssub.s32 384, 384
      %18 = vsyncadd [#allocation5], %s17
      %s19 = smul.addr %s15, 128
      %s20 = scalar_lea.hbm %s0, %s19
      %s21 = sshll.u32 [#allocation4], 4
      %s22 = int_to_ptr.vmem [resolvable:$true] %s21
      %27 = dma.hbm_to_vmem [thread:$0]  %s20, 384, %s22, [#allocation5], 128, 128, 8
    $region5: #{tpu_custom_call.1} parent=1 // pred_fallthru
      _
    // Predicated region
    $region6: #{tpu_custom_call.1} parent=1 // pred_check
      _
    $region7: #{tpu_custom_call.1} parent=1 // pred_check_branch
      %29 = sbr.rel (0) target = $region9
    $region8: #{tpu_custom_call.1} parent=1 // pred_region
      %s30 = sadd.s32 0, 0
      %s32 = ssub.s32 384, 384
      %33 = vsyncadd [#allocation7], %s32
      %s34 = smul.addr %s30, 128
      %s35 = scalar_lea.hbm %s1, %s34
      %s36 = sshll.u32 [#allocation6], 4
      %s37 = int_to_ptr.vmem [resolvable:$true] %s36
      %42 = dma.hbm_to_vmem [thread:$0]  %s35, 384, %s37, [#allocation7], 128, 128, 8
    $region9: #{tpu_custom_call.1} parent=1 // pred_fallthru
      _
    // Predicated region
    $region10: #{tpu_custom_call.1} parent=1 // pred_check
      _
    $region11: #{tpu_custom_call.1} parent=1 // pred_check_branch
      %44 = sbr.rel (0) target = $region13
    $region12: #{tpu_custom_call.1} parent=1 // pred_region
      _
    $region13: #{tpu_custom_call.1} parent=1 // pred_fallthru
      _
    // Predicated region
    $region14: #{tpu_custom_call.1} parent=1 // pred_check
      _
    $region15: #{tpu_custom_call.1} parent=1 // pred_check_branch
      %46 = sbr.rel (0) target = $region17
    $region16: #{tpu_custom_call.1} parent=1 // pred_region
      _
    $region17: #{tpu_custom_call.1} parent=1 // pred_fallthru
      _
    // Predicated region
    $region18: #{tpu_custom_call.1} parent=1 // pred_check
      _
    $region19: #{tpu_custom_call.1} parent=1 // pred_check_branch
      %48 = sbr.rel (0) target = $region21
    $region20: #{tpu_custom_call.1} parent=1 // pred_region
      %49 = dma.done [#allocation5], 384
    $region21: #{tpu_custom_call.1} parent=1 // pred_fallthru
      _
    // Predicated region
    $region22: #{tpu_custom_call.1} parent=1 // pred_check
      _
    $region23: #{tpu_custom_call.1} parent=1 // pred_check_branch
      %51 = sbr.rel (0) target = $region25
    $region24: #{tpu_custom_call.1} parent=1 // pred_region
      %52 = dma.done [#allocation7], 384
    $region25: #{tpu_custom_call.1} parent=1 // pred_fallthru
      _
    %s53 = sadd.s32 0, 0
    %s54 = sadd.s32 0, 0
    %p55 = scmp.eq.s32.totalorder 0, 0
    // Predicated region
    $region26: #{tpu_custom_call.1} parent=1 // pred_check
      %p56 = pneg %p55
    $region27: #{tpu_custom_call.1} parent=1 // pred_check_branch
      %58 = sbr.rel (%p56) target = $region29
    $region28: #{tpu_custom_call.1} parent=1 // pred_region
      %59 = vst [vmem:[#allocation2] sm:$0xff] 0.0
      %60 = vst [vmem:[#allocation2 + $0x8] sm:$0xff] 0.0
      %61 = vst [vmem:[#allocation2 + $0x10] sm:$0xff] 0.0
      %62 = vst [vmem:[#allocation3] sm:$0xff] 0.0
      %63 = vst [vmem:[#allocation3 + $0x8] sm:$0xff] 0.0
    $region29: #{tpu_custom_call.1} parent=1 // pred_fallthru
      _
    %v64 = vld [vmem:[#allocation4] sm:$0xff]
    %v65 = vld [vmem:[#allocation4 + $0x8] sm:$0xff]
    %v66 = vld [vmem:[#allocation4 + $0x10] sm:$0xff]
    %v67 = vld [vmem:[#allocation6] sm:$0xff]
    %v68 = vld [vmem:[#allocation6 + $0x8] sm:$0xff]
    %v69 = vld [vmem:[#allocation6 + $0x10] sm:$0xff]
    %v70 = vsub.f32 0.0, %v64
    %v71 = vsub.f32 0.0, %v65
    %v72 = vsub.f32 0.0, %v66
    %v73 = vmul.f32 %v70, 1.442695
    %v74 = vpow.pop %v73
    %v75 = vmul.f32 %v71, 1.442695
    %v76 = vpow.pop %v75
    %v77 = vmul.f32 %v72, 1.442695
    %v78 = vpow.pop %v77
    %v79 = vadd.f32 %v74, 1.0
    %v80 = vlog2.pop %v79
    %v81 = vmul.f32 %v80, 0.6931472
    %v82 = vmul.f32 -0.5, %v74
    %v83 = vadd.f32 %v82, 1.0
    %v84 = vmul.f32 %v83, %v74
    %v85 = vand.u32 2147483647, %v74
    %vm86 = vcmp.lt.f32.partialorder %v85, 0.0004427343
    %v87 = vsel %vm86, %v84, %v81
    %v88 = vadd.f32 %v76, 1.0
    %v89 = vlog2.pop %v88
    %v90 = vmul.f32 %v89, 0.6931472
    %v91 = vmul.f32 -0.5, %v76
    %v92 = vadd.f32 %v91, 1.0
    %v93 = vmul.f32 %v92, %v76
    %v94 = vand.u32 2147483647, %v76
    %vm95 = vcmp.lt.f32.partialorder %v94, 0.0004427343
    %v96 = vsel %vm95, %v93, %v90
    %v97 = vadd.f32 %v78, 1.0
    %v98 = vlog2.pop %v97
    %v99 = vmul.f32 %v98, 0.6931472
    %v100 = vmul.f32 -0.5, %v78
    %v101 = vadd.f32 %v100, 1.0
    %v102 = vmul.f32 %v101, %v78
    %v103 = vand.u32 2147483647, %v78
    %vm104 = vcmp.lt.f32.partialorder %v103, 0.0004427343
    %v105 = vsel %vm104, %v102, %v99
    %v106 = vsub.f32 0.0, %v87
    %v107 = vsub.f32 0.0, %v96
    %v108 = vsub.f32 0.0, %v105
    %v109 = vmax.f32 %v106, -100.0
    %v110 = vmax.f32 %v107, -100.0
    %v111 = vmax.f32 %v108, -100.0
    %v112 = vsub.f32 %v106, %v64
    %v113 = vsub.f32 %v107, %v65
    %v114 = vsub.f32 %v108, %v66
    %v115 = vmax.f32 %v112, -100.0
    %v116 = vmax.f32 %v113, -100.0
    %v117 = vmax.f32 %v114, -100.0
    %v118 = vmul.f32 %v67, %v109
    %v119 = vmul.f32 %v68, %v110
    %v120 = vmul.f32 %v69, %v111
    %v121 = vsub.f32 1.0, %v67
    %v122 = vsub.f32 1.0, %v68
    %v123 = vsub.f32 1.0, %v69
    %v124 = vmul.f32 %v121, %v115
    %v125 = vmul.f32 %v122, %v116
    %v126 = vmul.f32 %v123, %v117
    %v127 = vadd.f32 %v118, %v124
    %v128 = vadd.f32 %v119, %v125
    %v129 = vadd.f32 %v120, %v126
    %v130 = vsub.f32 0.0, %v127
    %v131 = vsub.f32 0.0, %v128
    %v132 = vsub.f32 0.0, %v129
    %v133 = vadd.f32 %v74, 1.0
    %v134 = vadd.f32 %v76, 1.0
    %v135 = vadd.f32 %v78, 1.0
    %v136 = vrcp.pop %v134
    %v137 = vmul.f32 %v133, %v136
    %v138 = vrcp.pop %v135
    %v139 = vmul.f32 %v134, %v138
    %v140 = vmax.f32 %v137, 1e-06
    %v141 = vmax.f32 %v139, 1e-06
    %v142 = vmin.f32 %v140, 1.0
    %v143 = vmin.f32 %v141, 1.0
    %v144 = vsub.f32 %v87, %v96
    %v145 = vsub.f32 %v96, %v105
    %v146 = vmax.f32 %v144, -13.815511
    %v147 = vmax.f32 %v145, -13.815511
    %v148 = vmin.f32 %v146, 0.0
    %v149 = vmin.f32 %v147, 0.0
    %v150 = vsub.f32 1.0, %v142
    %v151 = vsub.f32 1.0, %v143
    %v152 = vlog2.pop %v150
    %v153 = vmul.f32 %v152, 0.6931472
    %v154 = vlog2.pop %v151
    %v155 = vmul.f32 %v154, 0.6931472
    %v156 = vmax.f32 %v153, -100.0
    %v157 = vmax.f32 %v155, -100.0
    %v158 = vmin.f32 %v133, 100000.0
    %v159 = vmin.f32 %v134, 100000.0
    %v160 = vmul.f32 %v68, %v148
    %v161 = vmul.f32 %v69, %v149
    %v162 = vmul.f32 %v122, %v156
    %v163 = vmul.f32 %v123, %v157
    %v164 = vadd.f32 %v160, %v162
    %v165 = vadd.f32 %v161, %v163
    %v166 = vsub.f32 0.0, %v164
    %v167 = vsub.f32 0.0, %v165
    %v168 = vmul.f32 %v166, %v67
    %v169 = vmul.f32 %v167, %v68
    %v170 = vmul.f32 %v168, %v158
    %v171 = vmul.f32 %v169, %v159
    %s172 = sadd.s32 0, 0
    %p173 = scmp.lt.s32.totalorder %s172, 0
    // Predicated region
    $region30: #{tpu_custom_call.1} parent=1 // pred_check
      %p174 = pneg %p173
    $region31: #{tpu_custom_call.1} parent=1 // pred_check_branch
      %176 = sbr.rel (%p174) target = $region33
    $region32: #{tpu_custom_call.1} parent=1 // pred_region
      %v177 = vld [vmem:[#allocation2] sm:$0xff]
      %v178 = vld [vmem:[#allocation2 + $0x8] sm:$0xff]
      %v179 = vld [vmem:[#allocation2 + $0x10] sm:$0xff]
      %v180 = vadd.f32 %v177, %v130
      %v181 = vadd.f32 %v178, %v131
      %v182 = vadd.f32 %v179, %v132
      %183 = vst [vmem:[#allocation2] sm:$0xff] %v180
      %184 = vst [vmem:[#allocation2 + $0x8] sm:$0xff] %v181
      %185 = vst [vmem:[#allocation2 + $0x10] sm:$0xff] %v182
      %v186 = vld [vmem:[#allocation3] sm:$0xff]
      %v187 = vld [vmem:[#allocation3 + $0x8] sm:$0xff]
      %v188 = vadd.f32 %v186, %v170
      %v189 = vadd.f32 %v187, %v171
      %190 = vst [vmem:[#allocation3] sm:$0xff] %v188
      %191 = vst [vmem:[#allocation3 + $0x8] sm:$0xff] %v189
    $region33: #{tpu_custom_call.1} parent=1 // pred_fallthru
      _
    %p192 = scmp.ge.s32.totalorder %s172, 0
    // Predicated region
    $region34: #{tpu_custom_call.1} parent=1 // pred_check
      %p193 = pneg %p192
    $region35: #{tpu_custom_call.1} parent=1 // pred_check_branch
      %195 = sbr.rel (%p193) target = $region37
    $region36: #{tpu_custom_call.1} parent=1 // pred_region
      %s196 = smul.u32 %s172, 1024
      %v197 = vlaneseq
      %v198 = vshrl.u32 %v197, 7
      %v199 = vmul.u32 %v198, 128
      %v200 = vstv %s196
      %v201 = vadd.s32 %v200, %v199
      %v202 = vlaneseq
      %v203 = vand.u32 %v202, 127
      %v204 = vadd.s32 %v201, %v203
      %vm205 = vcmp.lt.s32.totalorder %v204, 8
      %v206 = vsel %vm205, %v130, 0.0
      %v207 = vsel %vm205, %v131, 0.0
      %v208 = vsel %vm205, %v132, 0.0
      %v209 = vsel %vm205, %v170, 0.0
      %v210 = vsel %vm205, %v171, 0.0
      %v211 = vld [vmem:[#allocation2] sm:$0xff]
      %v212 = vld [vmem:[#allocation2 + $0x8] sm:$0xff]
      %v213 = vld [vmem:[#allocation2 + $0x10] sm:$0xff]
      %v214 = vadd.f32 %v211, %v206
      %v215 = vadd.f32 %v212, %v207
      %v216 = vadd.f32 %v213, %v208
      %217 = vst [vmem:[#allocation2] sm:$0xff] %v214
      %218 = vst [vmem:[#allocation2 + $0x8] sm:$0xff] %v215
      %219 = vst [vmem:[#allocation2 + $0x10] sm:$0xff] %v216
      %v220 = vld [vmem:[#allocation3] sm:$0xff]
      %v221 = vld [vmem:[#allocation3 + $0x8] sm:$0xff]
      %v222 = vadd.f32 %v220, %v209
      %v223 = vadd.f32 %v221, %v210
      %224 = vst [vmem:[#allocation3] sm:$0xff] %v222
      %225 = vst [vmem:[#allocation3 + $0x8] sm:$0xff] %v223
    $region37: #{tpu_custom_call.1} parent=1 // pred_fallthru
      _
    // Predicated region
    $region38: #{tpu_custom_call.1} parent=1 // pred_check
      %p226 = pneg %p55
    $region39: #{tpu_custom_call.1} parent=1 // pred_check_branch
      %228 = sbr.rel (%p226) target = $region41
    $region40: #{tpu_custom_call.1} parent=1 // pred_region
      %v229 = vld [vmem:[#allocation2] sm:$0xff]
      %v230 = vld [vmem:[#allocation2 + $0x8] sm:$0xff]
      %v231 = vld [vmem:[#allocation2 + $0x10] sm:$0xff]
      %v232 = vrot.slane %v229, 4
      %v233 = vadd.f32 %v229, %v232
      %v234 = vrot.slane %v233, 2
      %v235 = vadd.f32 %v233, %v234
      %v236 = vrot.slane %v235, 1
      %v237 = vadd.f32 %v235, %v236
      %v238 = vrot.slane %v230, 4
      %v239 = vadd.f32 %v230, %v238
      %v240 = vrot.slane %v239, 2
      %v241 = vadd.f32 %v239, %v240
      %v242 = vrot.slane %v241, 1
      %v243 = vadd.f32 %v241, %v242
      %v244 = vrot.slane %v231, 4
      %v245 = vadd.f32 %v231, %v244
      %v246 = vrot.slane %v245, 2
      %v247 = vadd.f32 %v245, %v246
      %v248 = vrot.slane %v247, 1
      %v249 = vadd.f32 %v247, %v248
      %vm253 = vcmask 1041409
      %v254 = vsel %vm253, %v243, %v237
      %vm255 = vcmask 1042434
      %v256 = vsel %vm255, %v249, %v254
      %vm258 = vcmask 1042432
      %v259 = vsel %vm258, %v256, 0.0
      %260 = vadd.xlane.f32.xlu0 %v259
      %v261 = vpop.xlane.xlu0 %260
      %v262 = vld [vmem:[#allocation3] sm:$0xff]
      %v263 = vld [vmem:[#allocation3 + $0x8] sm:$0xff]
      %v264 = vrot.slane %v262, 4
      %v265 = vadd.f32 %v262, %v264
      %v266 = vrot.slane %v265, 2
      %v267 = vadd.f32 %v265, %v266
      %v268 = vrot.slane %v267, 1
      %v269 = vadd.f32 %v267, %v268
      %v270 = vrot.slane %v263, 4
      %v271 = vadd.f32 %v263, %v270
      %v272 = vrot.slane %v271, 2
      %v273 = vadd.f32 %v271, %v272
      %v274 = vrot.slane %v273, 1
      %v275 = vadd.f32 %v273, %v274
      %v278 = vsel %vm253, %v275, %v269
      %vm280 = vcmask 1041408
      %v281 = vsel %vm280, %v278, 0.0
      %282 = vadd.xlane.f32.xlu0 %v281
      %v283 = vpop.xlane.xlu0 %282
      %v284 = vmul.f32 %v261, 0.125
      %v285 = vld [vmem:[%s2] sm:$0x7]
      %v286 = vmul.f32 %v284, %v285
      %vm287 = vcmask 2048
      %288 = vst.msk [vmem:[%s4] sm:$0x7] %vm287, %v286
      %v289 = vmul.f32 %v283, 0.125
      %v290 = vld [vmem:[%s3] sm:$0x3]
      %v291 = vmul.f32 %v289, %v290
      %vm292 = vcmask 1024
      %293 = vst.msk [vmem:[%s5] sm:$0x3] %vm292, %v291
    $region41: #{tpu_custom_call.1} parent=1 // pred_fallthru
      _
    // Predicated region
    $region42: #{tpu_custom_call.1} parent=1 // pred_check
      _
    $region43: #{tpu_custom_call.1} parent=1 // pred_check_branch
      %295 = sbr.rel (0) target = $region45
    $region44: #{tpu_custom_call.1} parent=1 // pred_region
      _
    $region45: #{tpu_custom_call.1} parent=1 // pred_fallthru
      _
    // Predicated region
    $region46: #{tpu_custom_call.1} parent=1 // pred_check
      _
    $region47: #{tpu_custom_call.1} parent=1 // pred_check_branch
      %297 = sbr.rel (0) target = $region49
    $region48: #{tpu_custom_call.1} parent=1 // pred_region
      _
    $region49: #{tpu_custom_call.1} parent=1 // pred_fallthru
      _
    // Predicated region
    $region50: #{tpu_custom_call.1} parent=1 // pred_check
      _
    $region51: #{tpu_custom_call.1} parent=1 // pred_check_branch
      %299 = sbr.rel (0) target = $region53
    $region52: #{tpu_custom_call.1} parent=1 // pred_region
      _
    $region53: #{tpu_custom_call.1} parent=1 // pred_fallthru
      _
    // Predicated region
    $region54: #{tpu_custom_call.1} parent=1 // pred_check
      _
    $region55: #{tpu_custom_call.1} parent=1 // pred_check_branch
      %301 = sbr.rel (0) target = $region57
    $region56: #{tpu_custom_call.1} parent=1 // pred_region
      _
    $region57: #{tpu_custom_call.1} parent=1 // pred_fallthru
      _
    %302 = vsyncpa [#allocation5], 1
    %303 = vsyncpa [#allocation7], 1

</llo_original>
